<compile_context>
chip_gen: v7x
topology: tpu7x:2x2x1
jax: 0.10.0
libtpu: 0.0.40
codegen_flags: <defaults>
</compile_context>

<pallas_src>
import functools

import jax
import jax.numpy as jnp
from jax import lax
from jax.experimental import pallas as pl
from jax.experimental.pallas import tpu as pltpu


def _round_up(v, mult):
    return ((v + mult - 1) // mult) * mult


def _cosface_kernel(x_ref, w_ref, t_ref, o_ref, *, s, m, tile_c):
    # x_ref: (TILE_B, F) f32, w_ref: (TILE_C, F) f32, t_ref: (TILE_B, 1) i32,
    # o_ref: (TILE_B, TILE_C) f32
    x = x_ref[...].astype(jnp.float32)
    w = w_ref[...].astype(jnp.float32)

    # F.normalize(v, dim=1, eps=1e-12) == v / max(||v||, eps)
    #   -> 1/max(||v||, eps) == rsqrt(max(||v||^2, eps^2))   (EUP, no divide)
    eps2 = jnp.float32(1e-24)
    inv_xn = lax.rsqrt(
        jnp.maximum(jnp.sum(x * x, axis=-1, keepdims=True), eps2))  # (TB, 1)
    inv_wn = lax.rsqrt(
        jnp.maximum(jnp.sum(w * w, axis=-1, keepdims=True), eps2))  # (TC, 1)

    # Weight normalization as a lane-broadcast multiply on the operand side
    # (avoids a (TC,1)->(1,TC) relayout); x normalization folded into epilogue.
    wn = w * inv_wn

    # NT matmul on the MXU: contract last dim of both operands, no .T copy.
    raw = lax.dot_general(
        x, wn, (((1,), (1,)), ((), ())),
        preferred_element_type=jnp.float32)                         # (TB, TC)
    cosine = raw * inv_xn

    # Tile-aware one-hot margin, fused with the final scale:
    #   logits = s * cosine - (s*m) * one_hot(global_class_id == target)
    tb, tc = cosine.shape
    c_off = pl.program_id(0) * tile_c
    class_ids = lax.broadcasted_iota(jnp.int32, (tb, tc), 1) + c_off
    one_hot = (class_ids == t_ref[...]).astype(jnp.float32)

    o_ref[...] = (cosine * jnp.float32(s)
                  - jnp.float32(s * m) * one_hot).astype(o_ref.dtype)


def cosface_forward(x, weight, target, s=64.0, m=0.35,
                    tile_b=128, tile_c=512):
    """CosFace forward pass.

    Args:
      x: (B, F) float32 embeddings.
      weight: (C, F) float32 class weight matrix (same layout as nn.Linear).
      target: (B,) integer class labels.
    Returns:
      (B, C) float32 logits.
    """
    B, F = x.shape
    C, F2 = weight.shape
    assert F == F2

    # Shrink tiles for small problems, keeping sublane(8)/lane(128) alignment.
    tile_b = min(tile_b, _round_up(B, 8))
    tile_c = min(tile_c, _round_up(C, 128))
    Bp = _round_up(B, tile_b)
    Cp = _round_up(C, tile_c)

    xp = jnp.pad(x, ((0, Bp - B), (0, 0))) if Bp != B else x
    wp = jnp.pad(weight, ((0, Cp - C), (0, 0))) if Cp != C else weight
    tp = jnp.pad(target.astype(jnp.int32), (0, Bp - B),
                 constant_values=-1).reshape(Bp, 1)

    kernel = functools.partial(_cosface_kernel, s=float(s), m=float(m),
                               tile_c=tile_c)
    # Class axis OUTER, batch axis INNER: weight tile reused across inner loop.
    grid = (Cp // tile_c, Bp // tile_b)

    out = pl.pallas_call(
        kernel,
        out_shape=jax.ShapeDtypeStruct((Bp, Cp), jnp.float32),
        grid_spec=pltpu.PrefetchScalarGridSpec(
            num_scalar_prefetch=0,
            grid=grid,
            in_specs=[
                pl.BlockSpec((tile_b, F), lambda ic, ib: (ib, 0)),   # x
                pl.BlockSpec((tile_c, F), lambda ic, ib: (ic, 0)),   # weight
                pl.BlockSpec((tile_b, 1), lambda ic, ib: (ib, 0)),   # target
            ],
            out_specs=pl.BlockSpec((tile_b, tile_c),
                                   lambda ic, ib: (ib, ic)),
        ),
        compiler_params=pltpu.CompilerParams(
            dimension_semantics=("parallel", "parallel")),
    )(xp, wp, tp)

    if Bp != B or Cp != C:
        out = out[:B, :C]
    return out


def _xavier_uniform(key, out_features, in_features):
    # torch.nn.init.xavier_uniform_: U(-a, a), a = sqrt(6 / (fan_in + fan_out))
    bound = (6.0 / (in_features + out_features)) ** 0.5
    return jax.random.uniform(
        key, (out_features, in_features), dtype=jnp.float32,
        minval=-bound, maxval=bound)


if __name__ == "__main__":
    batch = 8
    in_features = 32
    out_features = 16
    s, m = 64.0, 0.35

    key = jax.random.PRNGKey(0)
    k_x, k_w, k_t = jax.random.split(key, 3)

    x = jax.random.normal(k_x, (batch, in_features), dtype=jnp.float32)
    weight = _xavier_uniform(k_w, out_features, in_features)
    target = jax.random.randint(k_t, (batch,), 0, out_features, dtype=jnp.int32)

    logits = cosface_forward(x, weight, target, s=s, m=m)
    jax.block_until_ready(logits)

    # Reference check in plain JAX (mirrors the PyTorch forward).
    xn = x / jnp.maximum(jnp.linalg.norm(x, axis=1, keepdims=True), 1e-12)
    wn = weight / jnp.maximum(
        jnp.linalg.norm(weight, axis=1, keepdims=True), 1e-12)
    cosine = xn @ wn.T
    one_hot = jax.nn.one_hot(target, out_features, dtype=jnp.float32)
    ref = (one_hot * (cosine - m) + (1.0 - one_hot) * cosine) * s

    assert logits.shape == (batch, out_features)
    assert jnp.allclose(logits, ref, atol=1e-4, rtol=1e-4)
    print("KERNEL_OK")
</pallas_src>

<mosaic_0001>
module attributes {stable_mosaic.version = 11 : i64} {
  func.func @_cosface_kernel(%arg0: i32, %arg1: i32, %arg2: memref<8x32xf32, #tpu.memory_space<vmem>>, %arg3: memref<128x32xf32, #tpu.memory_space<vmem>>, %arg4: memref<8x1xi32, #tpu.memory_space<vmem>>, %arg5: memref<8x128xf32, #tpu.memory_space<vmem>>) attributes {dimension_semantics = [#tpu.dimension_semantics<parallel>, #tpu.dimension_semantics<parallel>], iteration_bounds = array<i64: 1, 1>, scalar_prefetch = 0 : i64, scratch_operands = 0 : i64, tpu.core_type = #tpu.core_type<tc>, window_params = [{transform_indices = @transform_0, window_bounds = array<i64: 8, 32>}, {transform_indices = @transform_1, window_bounds = array<i64: 128, 32>}, {transform_indices = @transform_2, window_bounds = array<i64: 8, 1>}, {transform_indices = @transform_3, window_bounds = array<i64: 8, 128>}]} {
    %c0 = arith.constant 0 : index
    %c0_0 = arith.constant 0 : index
    %0 = vector.load %arg2[%c0, %c0_0] : memref<8x32xf32, #tpu.memory_space<vmem>>, vector<8x32xf32>
    %c0_1 = arith.constant 0 : index
    %c0_2 = arith.constant 0 : index
    %1 = vector.load %arg3[%c0_1, %c0_2] : memref<128x32xf32, #tpu.memory_space<vmem>>, vector<128x32xf32>
    %2 = arith.mulf %0, %0 : vector<8x32xf32>
    %cst = arith.constant dense<0.000000e+00> : vector<8xf32>
    %3 = vector.multi_reduction <add>, %2, %cst [1] : vector<8x32xf32> to vector<8xf32>
    %4 = vector.shape_cast %3 : vector<8xf32> to vector<8x1xf32>
    %cst_3 = arith.constant 1.000000e-24 : f32
    %5 = vector.broadcast %cst_3 : f32 to vector<8x1xf32>
    %6 = arith.maximumf %4, %5 : vector<8x1xf32>
    %7 = math.rsqrt %6 : vector<8x1xf32>
    %8 = arith.mulf %1, %1 : vector<128x32xf32>
    %cst_4 = arith.constant dense<0.000000e+00> : vector<128xf32>
    %9 = vector.multi_reduction <add>, %8, %cst_4 [1] : vector<128x32xf32> to vector<128xf32>
    %10 = vector.shape_cast %9 : vector<128xf32> to vector<128x1xf32>
    %cst_5 = arith.constant 1.000000e-24 : f32
    %11 = vector.broadcast %cst_5 : f32 to vector<128x1xf32>
    %12 = arith.maximumf %10, %11 : vector<128x1xf32>
    %13 = math.rsqrt %12 : vector<128x1xf32>
    %14 = vector.broadcast %13 : vector<128x1xf32> to vector<128x32xf32>
    %15 = arith.mulf %1, %14 : vector<128x32xf32>
    %cst_6 = arith.constant dense<0.000000e+00> : vector<8x128xf32>
    %16 = tpu.matmul %0, %15, %cst_6 {dimension_numbers = #tpu.dot_dimension_numbers<[1], [1], [0], [0], [0, 0, 1, 0], [], []>} : vector<8x32xf32>, vector<128x32xf32>, vector<8x128xf32> -> vector<8x128xf32>
    %17 = vector.broadcast %7 : vector<8x1xf32> to vector<8x128xf32>
    %18 = arith.mulf %16, %17 : vector<8x128xf32>
    %c128_i32 = arith.constant 128 : i32
    %19 = arith.muli %arg0, %c128_i32 : i32
    %20 = tpu.iota {dimensions = array<i32: 1>} : vector<8x128xi32>
    %21 = vector.broadcast %19 : i32 to vector<8x128xi32>
    %22 = arith.addi %20, %21 : vector<8x128xi32>
    %c0_7 = arith.constant 0 : index
    %c0_8 = arith.constant 0 : index
    %23 = vector.load %arg4[%c0_7, %c0_8] : memref<8x1xi32, #tpu.memory_space<vmem>>, vector<8x1xi32>
    %24 = vector.broadcast %23 : vector<8x1xi32> to vector<8x128xi32>
    %25 = arith.cmpi eq, %22, %24 : vector<8x128xi32>
    %26 = arith.extui %25 : vector<8x128xi1> to vector<8x128xi32>
    %27 = arith.sitofp %26 : vector<8x128xi32> to vector<8x128xf32>
    %cst_9 = arith.constant 6.400000e+01 : f32
    %28 = vector.broadcast %cst_9 : f32 to vector<8x128xf32>
    %29 = arith.mulf %18, %28 : vector<8x128xf32>
    %cst_10 = arith.constant 2.240000e+01 : f32
    %30 = vector.broadcast %cst_10 : f32 to vector<8x128xf32>
    %31 = arith.mulf %30, %27 : vector<8x128xf32>
    %32 = arith.subf %29, %31 : vector<8x128xf32>
    %c0_11 = arith.constant 0 : index
    %c0_12 = arith.constant 0 : index
    %33 = vector.load %arg5[%c0_11, %c0_12] : memref<8x128xf32, #tpu.memory_space<vmem>>, vector<8x128xf32>
    tpu.vector_store %arg5[%c0_11, %c0_12], %32 {strides = array<i32>} : memref<8x128xf32, #tpu.memory_space<vmem>>, vector<8x128xf32>,
    return
  }
  func.func @transform_0(%arg0: i32, %arg1: i32) -> (i32, i32) {
    %c0_i32 = arith.constant 0 : i32
    %c0_i32_0 = arith.constant 0 : i32
    return %arg1, %c0_i32 : i32, i32
  }
  func.func @transform_1(%arg0: i32, %arg1: i32) -> (i32, i32) {
    %c0_i32 = arith.constant 0 : i32
    %c0_i32_0 = arith.constant 0 : i32
    return %arg0, %c0_i32 : i32, i32
  }
  func.func @transform_2(%arg0: i32, %arg1: i32) -> (i32, i32) {
    %c0_i32 = arith.constant 0 : i32
    %c0_i32_0 = arith.constant 0 : i32
    return %arg1, %c0_i32 : i32, i32
  }
  func.func @transform_3(%arg0: i32, %arg1: i32) -> (i32, i32) {
    %c0_i32 = arith.constant 0 : i32
    return %arg1, %arg0 : i32, i32
  }
}

</mosaic_0001>

<llo_original>
// kernel: tpu_custom_call.1
$region0: #{tpu_custom_call.1}
  #allocation0 [shape = 'u32[]', space=smem, size = 0x4, offset = 0x4, fixed_abs, tag = 'smem constant byte address 0x4 - core index']
  #allocation1 [shape = 'u32[144,128]{1,0:T(1,128)}', space=vmem, size = 0x12000, scoped, tag = 'internal scratch']
  %s0 = inlined_call_operand.vmem [shape: f32[8,32], index: 0, kind: input, shape index: {}]
  %s1 = inlined_call_operand.vmem [shape: f32[128,32], index: 1, kind: input, shape index: {}]
  %s2 = inlined_call_operand.vmem [shape: s32[8,1], index: 2, kind: input, shape index: {}]
  %s3 = inlined_call_operand.hbm [shape: f32[8,128], index: 3, kind: output, shape index: {}]
  %s4 = sld [smem:[#allocation0]]
  $region22: #{tpu_custom_call.1} parent=0
    _
  %s6 = ssub.s32 1, %s4
  %s7 = scalar_select 0, %s6, %s4
  $region1: #{tpu_custom_call.1} parent=0
    #allocation2 [shape = 'u8[4096]{0}', space=vmem, size = 0x1000, scoped, tag = 'output window, operand 0, single buffered']
    #allocation3 [shape = 's32[1]{0}', space=sflag, size = 0x4, scoped, tag = 'scoped memory for tpu_custom_call.1']
    %8 = vsyncpa [#allocation3], 0
    // Predicated region
    $region2: #{tpu_custom_call.1} parent=1 // pred_check
      _
    $region3: #{tpu_custom_call.1} parent=1 // pred_check_branch
      %10 = sbr.rel (0) target = $region5
    $region4: #{tpu_custom_call.1} parent=1 // pred_region
      _
    $region5: #{tpu_custom_call.1} parent=1 // pred_fallthru
      _
    // Predicated region
    $region6: #{tpu_custom_call.1} parent=1 // pred_check
      _
    $region7: #{tpu_custom_call.1} parent=1 // pred_check_branch
      %12 = sbr.rel (0) target = $region9
    $region8: #{tpu_custom_call.1} parent=1 // pred_region
      _
    $region9: #{tpu_custom_call.1} parent=1 // pred_fallthru
      _
    // Predicated region
    $region10: #{tpu_custom_call.1} parent=1 // pred_check
      _
    $region11: #{tpu_custom_call.1} parent=1 // pred_check_branch
      %14 = sbr.rel (0) target = $region13
    $region12: #{tpu_custom_call.1} parent=1 // pred_region
      _
    $region13: #{tpu_custom_call.1} parent=1 // pred_fallthru
      _
    %v15 = vld [vmem:[%s0] sm:$0xff]
    %v16 = vld [vmem:[%s1] sm:$0xff]
    %v17 = vld [vmem:[%s1 + $0x8] sm:$0xff]
    %v18 = vld [vmem:[%s1 + $0x10] sm:$0xff]
    %v19 = vld [vmem:[%s1 + $0x18] sm:$0xff]
    %v20 = vld [vmem:[%s1 + $0x20] sm:$0xff]
    %v21 = vld [vmem:[%s1 + $0x28] sm:$0xff]
    %v22 = vld [vmem:[%s1 + $0x30] sm:$0xff]
    %v23 = vld [vmem:[%s1 + $0x38] sm:$0xff]
    %v24 = vld [vmem:[%s1 + $0x40] sm:$0xff]
    %v25 = vld [vmem:[%s1 + $0x48] sm:$0xff]
    %v26 = vld [vmem:[%s1 + $0x50] sm:$0xff]
    %v27 = vld [vmem:[%s1 + $0x58] sm:$0xff]
    %v28 = vld [vmem:[%s1 + $0x60] sm:$0xff]
    %v29 = vld [vmem:[%s1 + $0x68] sm:$0xff]
    %v30 = vld [vmem:[%s1 + $0x70] sm:$0xff]
    %v31 = vld [vmem:[%s1 + $0x78] sm:$0xff]
    %v32 = vmul.f32 %v15, %v15
    %vm33 = vcmask 261120
    %v34 = vsel %vm33, %v32, 0.0
    %35 = vadd.xlane.f32.xlu0 %v34
    %v36 = vpop.xlane.xlu0 %35
    %v37 = vmax.f32 %v36, 1e-24
    %v38 = vrsqrt.pop %v37
    %v39 = vmul.f32 %v16, %v16
    %v40 = vmul.f32 %v17, %v17
    %v41 = vmul.f32 %v18, %v18
    %v42 = vmul.f32 %v19, %v19
    %v43 = vmul.f32 %v20, %v20
    %v44 = vmul.f32 %v21, %v21
    %v45 = vmul.f32 %v22, %v22
    %v46 = vmul.f32 %v23, %v23
    %v47 = vmul.f32 %v24, %v24
    %v48 = vmul.f32 %v25, %v25
    %v49 = vmul.f32 %v26, %v26
    %v50 = vmul.f32 %v27, %v27
    %v51 = vmul.f32 %v28, %v28
    %v52 = vmul.f32 %v29, %v29
    %v53 = vmul.f32 %v30, %v30
    %v54 = vmul.f32 %v31, %v31
    %v55 = vsel %vm33, %v39, 0.0
    %56 = vadd.xlane.f32.xlu0 %v55
    %v57 = vpop.xlane.xlu0 %56
    %v58 = vsel %vm33, %v40, 0.0
    %59 = vadd.xlane.f32.xlu0 %v58
    %v60 = vpop.xlane.xlu0 %59
    %v61 = vsel %vm33, %v41, 0.0
    %62 = vadd.xlane.f32.xlu0 %v61
    %v63 = vpop.xlane.xlu0 %62
    %v64 = vsel %vm33, %v42, 0.0
    %65 = vadd.xlane.f32.xlu0 %v64
    %v66 = vpop.xlane.xlu0 %65
    %v67 = vsel %vm33, %v43, 0.0
    %68 = vadd.xlane.f32.xlu0 %v67
    %v69 = vpop.xlane.xlu0 %68
    %v70 = vsel %vm33, %v44, 0.0
    %71 = vadd.xlane.f32.xlu0 %v70
    %v72 = vpop.xlane.xlu0 %71
    %v73 = vsel %vm33, %v45, 0.0
    %74 = vadd.xlane.f32.xlu0 %v73
    %v75 = vpop.xlane.xlu0 %74
    %v76 = vsel %vm33, %v46, 0.0
    %77 = vadd.xlane.f32.xlu0 %v76
    %v78 = vpop.xlane.xlu0 %77
    %v79 = vsel %vm33, %v47, 0.0
    %80 = vadd.xlane.f32.xlu0 %v79
    %v81 = vpop.xlane.xlu0 %80
    %v82 = vsel %vm33, %v48, 0.0
    %83 = vadd.xlane.f32.xlu0 %v82
    %v84 = vpop.xlane.xlu0 %83
    %v85 = vsel %vm33, %v49, 0.0
    %86 = vadd.xlane.f32.xlu0 %v85
    %v87 = vpop.xlane.xlu0 %86
    %v88 = vsel %vm33, %v50, 0.0
    %89 = vadd.xlane.f32.xlu0 %v88
    %v90 = vpop.xlane.xlu0 %89
    %v91 = vsel %vm33, %v51, 0.0
    %92 = vadd.xlane.f32.xlu0 %v91
    %v93 = vpop.xlane.xlu0 %92
    %v94 = vsel %vm33, %v52, 0.0
    %95 = vadd.xlane.f32.xlu0 %v94
    %v96 = vpop.xlane.xlu0 %95
    %v97 = vsel %vm33, %v53, 0.0
    %98 = vadd.xlane.f32.xlu0 %v97
    %v99 = vpop.xlane.xlu0 %98
    %v100 = vsel %vm33, %v54, 0.0
    %101 = vadd.xlane.f32.xlu0 %v100
    %v102 = vpop.xlane.xlu0 %101
    %v103 = vmax.f32 %v57, 1e-24
    %v104 = vmax.f32 %v60, 1e-24
    %v105 = vmax.f32 %v63, 1e-24
    %v106 = vmax.f32 %v66, 1e-24
    %v107 = vmax.f32 %v69, 1e-24
    %v108 = vmax.f32 %v72, 1e-24
    %v109 = vmax.f32 %v75, 1e-24
    %v110 = vmax.f32 %v78, 1e-24
    %v111 = vmax.f32 %v81, 1e-24
    %v112 = vmax.f32 %v84, 1e-24
    %v113 = vmax.f32 %v87, 1e-24
    %v114 = vmax.f32 %v90, 1e-24
    %v115 = vmax.f32 %v93, 1e-24
    %v116 = vmax.f32 %v96, 1e-24
    %v117 = vmax.f32 %v99, 1e-24
    %v118 = vmax.f32 %v102, 1e-24
    %v119 = vrsqrt.pop %v103
    %v120 = vrsqrt.pop %v104
    %v121 = vrsqrt.pop %v105
    %v122 = vrsqrt.pop %v106
    %v123 = vrsqrt.pop %v107
    %v124 = vrsqrt.pop %v108
    %v125 = vrsqrt.pop %v109
    %v126 = vrsqrt.pop %v110
    %v127 = vrsqrt.pop %v111
    %v128 = vrsqrt.pop %v112
    %v129 = vrsqrt.pop %v113
    %v130 = vrsqrt.pop %v114
    %v131 = vrsqrt.pop %v115
    %v132 = vrsqrt.pop %v116
    %v133 = vrsqrt.pop %v117
    %v134 = vrsqrt.pop %v118
    %v135 = vmul.f32 %v16, %v119
    %v136 = vmul.f32 %v17, %v120
    %v137 = vmul.f32 %v18, %v121
    %v138 = vmul.f32 %v19, %v122
    %v139 = vmul.f32 %v20, %v123
    %v140 = vmul.f32 %v21, %v124
    %v141 = vmul.f32 %v22, %v125
    %v142 = vmul.f32 %v23, %v126
    %v143 = vmul.f32 %v24, %v127
    %v144 = vmul.f32 %v25, %v128
    %v145 = vmul.f32 %v26, %v129
    %v146 = vmul.f32 %v27, %v130
    %v147 = vmul.f32 %v28, %v131
    %v148 = vmul.f32 %v29, %v132
    %v149 = vmul.f32 %v30, %v133
    %v150 = vmul.f32 %v31, %v134
    %v152 = vsel %vm33, %v15, 0
    %v155 = vsel %vm33, %v135, 0
    %v158 = vsel %vm33, %v136, 0
    %v161 = vsel %vm33, %v137, 0
    %v164 = vsel %vm33, %v138, 0
    %v167 = vsel %vm33, %v139, 0
    %v170 = vsel %vm33, %v140, 0
    %v173 = vsel %vm33, %v141, 0
    %v176 = vsel %vm33, %v142, 0
    %v179 = vsel %vm33, %v143, 0
    %v182 = vsel %vm33, %v144, 0
    %v185 = vsel %vm33, %v145, 0
    %v188 = vsel %vm33, %v146, 0
    %v191 = vsel %vm33, %v147, 0
    %v194 = vsel %vm33, %v148, 0
    %v197 = vsel %vm33, %v149, 0
    %v200 = vsel %vm33, %v150, 0
    %202 = vmatprep.subr.mxu0 0.0
    %203 = vmatpush1.xpose.msra.mxu0 %v155
    %204 = vmatprep.subr.mxu0 0.0
    %205 = vmatpush1.xpose.msra.mxu0 %v158
    %206 = vmatprep.subr.mxu0 0.0
    %207 = vmatpush1.xpose.msra.mxu0 %v161
    %208 = vmatprep.subr.mxu0 0.0
    %209 = vmatpush1.xpose.msra.mxu0 %v164
    %210 = vmatprep.subr.mxu0 0.0
    %211 = vmatpush1.xpose.msra.mxu0 %v167
    %212 = vmatprep.subr.mxu0 0.0
    %213 = vmatpush1.xpose.msra.mxu0 %v170
    %214 = vmatprep.subr.mxu0 0.0
    %215 = vmatpush1.xpose.msra.mxu0 %v173
    %216 = vmatprep.subr.mxu0 0.0
    %217 = vmatpush1.xpose.msra.mxu0 %v176
    %218 = vmatprep.subr.mxu0 0.0
    %219 = vmatpush1.xpose.msra.mxu0 %v179
    %220 = vmatprep.subr.mxu0 0.0
    %221 = vmatpush1.xpose.msra.mxu0 %v182
    %222 = vmatprep.subr.mxu0 0.0
    %223 = vmatpush1.xpose.msra.mxu0 %v185
    %224 = vmatprep.subr.mxu0 0.0
    %225 = vmatpush1.xpose.msra.mxu0 %v188
    %226 = vmatprep.subr.mxu0 0.0
    %227 = vmatpush1.xpose.msra.mxu0 %v191
    %228 = vmatprep.subr.mxu0 0.0
    %229 = vmatpush1.xpose.msra.mxu0 %v194
    %230 = vmatprep.subr.mxu0 0.0
    %231 = vmatpush1.xpose.msra.mxu0 %v197
    %232 = vmatprep.subr.mxu0 0.0
    %233 = vmatpush1.xpose.msra.mxu0 %v200
    %234 = vmatprep.subr.mxu0 0.0
    %235 = vmatpush1.xpose.msra.mxu0 0.0
    %236 = vmatprep.subr.mxu0 0.0
    %237 = vmatpush1.xpose.msra.mxu0 0.0
    %238 = vmatprep.subr.mxu0 0.0
    %239 = vmatpush1.xpose.msra.mxu0 0.0
    %240 = vmatprep.subr.mxu0 0.0
    %241 = vmatpush1.xpose.msra.mxu0 0.0
    %242 = vmatprep.subr.mxu0 0.0
    %243 = vmatpush1.xpose.msra.mxu0 0.0
    %244 = vmatprep.subr.mxu0 0.0
    %245 = vmatpush1.xpose.msra.mxu0 0.0
    %246 = vmatprep.subr.mxu0 0.0
    %247 = vmatpush1.xpose.msra.mxu0 0.0
    %248 = vmatprep.subr.mxu0 0.0
    %249 = vmatpush1.xpose.msra.mxu0 0.0
    %250 = vmatprep.subr.mxu0 0.0
    %251 = vmatpush1.xpose.msra.mxu0 0.0
    %252 = vmatprep.subr.mxu0 0.0
    %253 = vmatpush1.xpose.msra.mxu0 0.0
    %254 = vmatprep.subr.mxu0 0.0
    %255 = vmatpush1.xpose.msra.mxu0 0.0
    %256 = vmatprep.subr.mxu0 0.0
    %257 = vmatpush1.xpose.msra.mxu0 0.0
    %258 = vmatprep.subr.mxu0 0.0
    %259 = vmatpush1.xpose.msra.mxu0 0.0
    %260 = vmatprep.subr.mxu0 0.0
    %261 = vmatpush1.xpose.msra.mxu0 0.0
    %262 = vmatprep.subr.mxu0 0.0
    %263 = vmatpush1.xpose.msra.mxu0 0.0
    %264 = vmatprep.subr.mxu0 0.0
    %265 = vmatpush1.xpose.msra.mxu0 0.0
    %266 = vmatprep.mubr.f32.mxu0 0.0
    %267 = vmatmul.mubr.f32.gmra.mrb[0].mxu0 %v152
    %v268 = vpop.f32.mrb[0].mxu0
    %v269 = vadd.f32 0.0, %v268
    %v270 = vpop.f32.mrb[0].mxu0
    %271 = vdwg.mxu0
    %v272 = vmul.f32 %v269, %v38
    %s273 = smul.u32 0, 128
    %v274 = vlaneseq
    %v275 = vand.u32 %v274, 127
    %v276 = vstv %s273
    %v277 = vadd.s32 %v275, %v276
    %v278 = vld [vmem:[%s2] sm:$0xff]
    %279 = vset.pattern.permute.xlu0 0
    %280 = vperm.xlu0 %279, %v278
    %v281 = vpop.permute.xlu0 %280
    %vm282 = vcmp.eq.s32.totalorder %v277, %v281
    %v283 = vsel %vm282, 1, 0
    %v284 = vcvt.s32.f32 %v283
    %v285 = vmul.f32 %v272, 64.0
    %v286 = vmul.f32 %v284, 22.4
    %v287 = vsub.f32 %v285, %v286
    %288 = vst [vmem:[#allocation2] sm:$0xff] %v287
    // Predicated region
    $region14: #{tpu_custom_call.1} parent=1 // pred_check
      _
    $region15: #{tpu_custom_call.1} parent=1 // pred_check_branch
      %290 = sbr.rel (0) target = $region17
    $region16: #{tpu_custom_call.1} parent=1 // pred_region
      %s292 = ssub.s32 128, 128
      %293 = vsyncadd [#allocation3], %s292
      %s295 = sshll.u32 [#allocation2], 4
      %s296 = int_to_ptr.vmem [resolvable:$true] %s295
      %298 = dma.vmem_to_hbm [thread:$0]  %s296, 128, %s3, [#allocation3]
    $region17: #{tpu_custom_call.1} parent=1 // pred_fallthru
      _
    // Predicated region
    $region18: #{tpu_custom_call.1} parent=1 // pred_check
      _
    $region19: #{tpu_custom_call.1} parent=1 // pred_check_branch
      %300 = sbr.rel (0) target = $region21
    $region20: #{tpu_custom_call.1} parent=1 // pred_region
      %301 = dma.done [#allocation3], 128
    $region21: #{tpu_custom_call.1} parent=1 // pred_fallthru
      _
    %302 = vsyncpa [#allocation3], 1

</llo_original>
